<compile_context>
chip_gen: v5e
topology: v5e:2x2
jax: 0.10.0
libtpu: 0.0.40
codegen_flags: <defaults>
</compile_context>

<pallas_src>
import jax
import jax.numpy as jnp
from jax.experimental import pallas as pl
from jax.experimental.pallas import tpu as pltpu


def _decoder_step_kernel(gi_ref, h0_ref, enc_ref, mask_ref, sel_ref,
                         whh_ref, bhh_ref, wcat_ref, bcat_ref,
                         wout_ref, bout_ref,
                         packed_ref, hstate_ref):
  """One decode step; grid axis 0 is the (teacher-forced) time step."""
  t = pl.program_id(0)
  B, H = hstate_ref.shape
  L = sel_ref.shape[1]

  # Initialize the VMEM-resident hidden state from the provided last_hidden.
  @pl.when(t == 0)
  def _():
    hstate_ref[...] = h0_ref[...]

  def mm(a, b):
    # MXU matmul; cast lhs to the (possibly bf16) weight dtype, accumulate f32.
    return jax.lax.dot_general(a.astype(b.dtype), b,
                               (((1,), (0,)), ((), ())),
                               preferred_element_type=jnp.float32)

  h = hstate_ref[...]                      # (B, H)  f32, carried across steps
  gi = gi_ref[...]                         # (B, 3H) f32 = x @ W_ih^T + b_ih

  # --- single-layer GRU cell (PyTorch gate order r, z, n) ---
  gh = mm(h, whh_ref[...]) + bhh_ref[...]  # (B, 3H) f32
  r = jax.nn.sigmoid(gi[:, 0:H] + gh[:, 0:H])
  z = jax.nn.sigmoid(gi[:, H:2 * H] + gh[:, H:2 * H])
  n = jnp.tanh(gi[:, 2 * H:3 * H] + r * gh[:, 2 * H:3 * H])
  h_new = (1.0 - z) * n + z * h            # (B, H) f32

  # --- 'dot' attention over flattened encoder outputs (L*B, H) ---
  enc = enc_ref[...]                       # (L*B, H), row i = (l, b): i = l*B + b
  e = jax.lax.dot_general(h_new.astype(enc.dtype), enc,
                          (((1,), (1,)), ((), ())),
                          preferred_element_type=jnp.float32)   # (B, L*B)
  e = e + mask_ref[...]                    # -1e30 where column's b != row's b
  m = jnp.max(e, axis=-1, keepdims=True)
  p = jnp.exp(e - m)
  attn_full = p / jnp.sum(p, axis=-1, keepdims=True)  # exact divide (B, L*B)

  # context[b] = sum_l attn[b,l] * enc[l,b]; masked entries are exactly 0.
  context = mm(attn_full, enc)                         # (B, H)  f32
  # Extract per-step (B, L) attention weights with a 0/1 selection matmul.
  attn_bl = mm(attn_full, sel_ref[...])                # (B, L)  f32

  # --- concat Linear + tanh: two matmuls into one accumulator (no concat) ---
  wcat = wcat_ref[...]                                 # (2H, H)
  concat_out = jnp.tanh(mm(h_new, wcat[:H, :]) + mm(context, wcat[H:, :])
                        + bcat_ref[...])               # (B, H)

  # --- fused output heads ---
  out_all = mm(concat_out, wout_ref[...]) + bout_ref[...]   # (B, n_out)

  # --- single lane-dense packed store: [attn | out_all | zero pad] ---
  pad = packed_ref.shape[1] - (L + out_all.shape[1])
  pieces = [attn_bl, out_all]
  if pad:
    pieces.append(jnp.zeros((B, pad), jnp.float32))
  packed_ref[...] = jnp.concatenate(pieces, axis=-1)

  hstate_ref[...] = h_new                   # carry hidden state to next step


def init_params(key, hidden_size, output_size_set):
  """Deterministic init mirroring the PyTorch module's parameter shapes."""
  H = hidden_size
  cats = tuple(output_size_set.keys())
  ks = jax.random.split(key, 8 + 2 * len(cats))
  u = lambda k, shape, b: jax.random.uniform(k, shape, jnp.float32, -b, b)

  kgru = 1.0 / (H ** 0.5)
  p = {
      'embedding': jax.random.normal(ks[0], (output_size_set['pinyin'], H),
                                     jnp.float32),
      # PyTorch GRU weight_ih_l0 / weight_hh_l0: (3H, H), gate order r,z,n.
      'w_ih': u(ks[1], (3 * H, H), kgru),
      'w_hh': u(ks[2], (3 * H, H), kgru),
      'b_ih': u(ks[3], (3 * H,), kgru),
      'b_hh': u(ks[4], (3 * H,), kgru),
  }
  kc = 1.0 / ((2 * H) ** 0.5)
  p['concat_w'] = u(ks[5], (H, 2 * H), kc)   # nn.Linear layout (out, in)
  p['concat_b'] = u(ks[6], (H,), kc)

  ko = 1.0 / (H ** 0.5)
  for i, cat in enumerate(cats):
    osz = output_size_set[cat]
    p[f'out_{cat}_w'] = u(ks[7 + 2 * i], (osz, H), ko)
    p[f'out_{cat}_b'] = u(ks[8 + 2 * i], (osz,), ko)
  p['categories'] = cats
  return p


def prepare_kernel_params(params, mxu_dtype=jnp.float32):
  """Pack/fuse raw (PyTorch-layout) params into kernel weight arrays.

  mxu_dtype=jnp.bfloat16 stores the matmul RHS operands in bf16 (v6e/v7x fast
  path); biases and all elementwise math stay f32.
  """
  H = params['w_hh'].shape[1]
  cats = params['categories']

  # Fold W_ih (+ b_ih) into the embedding table: one gather yields gi = r|z|n.
  gi_table = (params['embedding'] @ params['w_ih'].T
              + params['b_ih']).astype(jnp.float32)            # (V, 3H)

  w_hh = params['w_hh'].T.astype(mxu_dtype)                    # (H, 3H)
  b_hh = params['b_hh'][None, :].astype(jnp.float32)           # (1, 3H)

  # rows 0:H multiply rnn_output, rows H:2H multiply context
  # (matches torch.cat((rnn_output, context), 1) @ concat_w.T).
  w_cat = params['concat_w'].T.astype(mxu_dtype)               # (2H, H)
  b_cat = params['concat_b'][None, :].astype(jnp.float32)      # (1, H)

  w_out = jnp.concatenate([params[f'out_{c}_w'].T for c in cats],
                          axis=1).astype(mxu_dtype)            # (H, n_out)
  b_out = jnp.concatenate([params[f'out_{c}_b'] for c in cats],
                          axis=0)[None, :].astype(jnp.float32) # (1, n_out)

  splits = tuple((c, int(params[f'out_{c}_w'].shape[0])) for c in cats)
  return {'gi_table': gi_table, 'w_hh': w_hh, 'b_hh': b_hh,
          'w_cat': w_cat, 'b_cat': b_cat, 'w_out': w_out, 'b_out': b_out,
          'out_splits': splits}


def luong_attn_decoder_decode(kparams, input_tokens, last_hidden,
                              encoder_outputs):
  """Teacher-forced multi-step decode with weights resident in VMEM.

  input_tokens: (T, B) int32; last_hidden: (1, B, H); encoder_outputs: (L, B, H).
  Returns ({cat: (T, B, osz)}, final_hidden (1, B, H), attn (T, B, 1, L)).
  """
  T, B = input_tokens.shape
  L, _, H = encoder_outputs.shape
  mxu_dtype = kparams['w_hh'].dtype
  n_out = kparams['w_out'].shape[1]

  # Embedding + GRU input transform for ALL steps in one gather (amortized).
  gi_all = jnp.take(kparams['gi_table'], input_tokens.reshape(T * B), axis=0)
  gi_all = gi_all.reshape(T, B, 3 * H)

  h0 = last_hidden[0].astype(jnp.float32)                       # (B, H)
  # (L, B, H) -> (L*B, H): contiguous reshape, NO transpose; row i = l*B + b.
  enc_flat = encoder_outputs.reshape(L * B, H).astype(mxu_dtype)

  # Static attention mask / selection matrix (constant across the grid).
  rows = jnp.arange(B, dtype=jnp.int32)
  cols = jnp.arange(L * B, dtype=jnp.int32)
  mask = jnp.where((cols[None, :] % B) == rows[:, None],
                   0.0, -1e30).astype(jnp.float32)               # (B, L*B)
  sel = ((cols[:, None] // B)
         == jnp.arange(L, dtype=jnp.int32)[None, :]).astype(jnp.float32)

  P = ((L + n_out + 127) // 128) * 128      # lane-dense packed output width

  def const(shape):
    return pl.BlockSpec(shape, lambda t, _s=shape: (0,) * len(_s))

  in_specs = [
      pl.BlockSpec((None, B, 3 * H), lambda t: (t, 0, 0)),   # gi (per step)
      const((B, H)),          # h0
      const((L * B, H)),      # encoder outputs (resident)
      const((B, L * B)),      # additive attention mask
      const((L * B, L)),      # attention selection matrix
      const((H, 3 * H)),      # W_hh^T
      const((1, 3 * H)),      # b_hh
      const((2 * H, H)),      # W_concat^T
      const((1, H)),          # b_concat
      const((H, n_out)),      # fused output heads W^T
      const((1, n_out)),      # fused output biases
  ]
  out_specs = (
      pl.BlockSpec((None, B, P), lambda t: (t, 0, 0)),        # packed per step
      const((B, H)),          # hidden state (resident accumulator)
  )

  packed, h_final = pl.pallas_call(
      _decoder_step_kernel,
      grid=(T,),
      in_specs=in_specs,
      out_specs=out_specs,
      out_shape=(jax.ShapeDtypeStruct((T, B, P), jnp.float32),
                 jax.ShapeDtypeStruct((B, H), jnp.float32)),
      compiler_params=pltpu.CompilerParams(
          dimension_semantics=("arbitrary",)),   # sequential h carry
  )(gi_all, h0, enc_flat, mask, sel,
    kparams['w_hh'], kparams['b_hh'], kparams['w_cat'], kparams['b_cat'],
    kparams['w_out'], kparams['b_out'])

  attn = packed[:, :, :L].reshape(T, B, 1, L)
  out_all = packed[:, :, L:L + n_out]
  outputs = {}
  off = 0
  for cat, osz in kparams['out_splits']:
    outputs[cat] = out_all[:, :, off:off + osz]
    off += osz
  return outputs, h_final[None], attn


def luong_attn_decoder_forward(kparams, input_seq, last_hidden,
                               encoder_outputs):
  """Single-step forward matching LuongAttnDecoderRNN.forward (T=1)."""
  outputs, hidden, attn = luong_attn_decoder_decode(
      kparams, input_seq[None, :], last_hidden, encoder_outputs)
  output = {cat: outputs[cat][0] for cat in outputs}
  return output, hidden, attn[0]          # attn: (B, 1, L) like unsqueeze(1)


def reference_forward(params, input_seq, last_hidden, encoder_outputs):
  """Pure-JAX reference of the same forward pass (sanity check)."""
  H = params['w_hh'].shape[1]
  x = jnp.take(params['embedding'], input_seq, axis=0)
  h = last_hidden[0]
  gi = x @ params['w_ih'].T + params['b_ih']
  gh = h @ params['w_hh'].T + params['b_hh']
  r = jax.nn.sigmoid(gi[:, :H] + gh[:, :H])
  z = jax.nn.sigmoid(gi[:, H:2 * H] + gh[:, H:2 * H])
  n = jnp.tanh(gi[:, 2 * H:] + r * gh[:, 2 * H:])
  h_new = (1 - z) * n + z * h
  energies = jnp.einsum('bh,lbh->bl', h_new, encoder_outputs)
  attn = jax.nn.softmax(energies, axis=-1)
  context = jnp.einsum('bl,lbh->bh', attn, encoder_outputs)
  concat_out = jnp.tanh(
      jnp.concatenate([h_new, context], axis=-1) @ params['concat_w'].T
      + params['concat_b'])
  out = {cat: concat_out @ params[f'out_{cat}_w'].T + params[f'out_{cat}_b']
         for cat in params['categories']}
  return out, h_new[None], attn[:, None, :]


if __name__ == "__main__":
  key = jax.random.PRNGKey(0)
  B, H, L = 2, 32, 8
  output_size_set = {'pinyin': 40, 'tone': 8}

  kp, ki, kh, ke, kt = jax.random.split(key, 5)
  params = init_params(kp, H, output_size_set)
  kparams = prepare_kernel_params(params)                 # f32 MXU operands

  input_seq = jax.random.randint(ki, (B,), 0, output_size_set['pinyin'],
                                 dtype=jnp.int32)
  last_hidden = jax.random.normal(kh, (1, B, H), jnp.float32)
  encoder_outputs = jax.random.normal(ke, (L, B, H), jnp.float32)

  # --- single-step forward (module semantics) ---
  output, hidden, attn_weights = luong_attn_decoder_forward(
      kparams, input_seq, last_hidden, encoder_outputs)
  jax.block_until_ready((output, hidden, attn_weights))

  ref_out, ref_hidden, ref_attn = reference_forward(
      params, input_seq, last_hidden, encoder_outputs)
  for cat in output:
    assert jnp.allclose(output[cat], ref_out[cat], atol=2e-3), cat
  assert jnp.allclose(hidden, ref_hidden, atol=2e-3)
  assert jnp.allclose(attn_weights, ref_attn, atol=2e-3)

  # --- multi-step decode: grid=(T,), hidden carried in VMEM across steps ---
  T = 4
  tokens = jax.random.randint(kt, (T, B), 0, output_size_set['pinyin'],
                              dtype=jnp.int32)
  outs_T, hid_T, attn_T = luong_attn_decoder_decode(
      kparams, tokens, last_hidden, encoder_outputs)
  jax.block_until_ready((outs_T, hid_T, attn_T))

  h_ref = last_hidden
  for t in range(T):
    r_out, h_ref, r_attn = reference_forward(params, tokens[t], h_ref,
                                             encoder_outputs)
    for cat in r_out:
      assert jnp.allclose(outs_T[cat][t], r_out[cat], atol=5e-3), (t, cat)
    assert jnp.allclose(attn_T[t], r_attn, atol=5e-3), t
  assert jnp.allclose(hid_T, h_ref, atol=5e-3)

  # --- bf16 MXU-operand variant (v6e/v7x fast path), loose sanity bound ---
  kparams_bf16 = prepare_kernel_params(params, mxu_dtype=jnp.bfloat16)
  output_b, hidden_b, attn_b = luong_attn_decoder_forward(
      kparams_bf16, input_seq, last_hidden, encoder_outputs)
  jax.block_until_ready((output_b, hidden_b, attn_b))
  for cat in output_b:
    assert jnp.allclose(output_b[cat], ref_out[cat], atol=1e-1), cat
  assert jnp.allclose(hidden_b, ref_hidden, atol=1e-1)
  assert jnp.allclose(attn_b, ref_attn, atol=1e-1)

  print("KERNEL_OK")
</pallas_src>

<mosaic_0001>
module attributes {stable_mosaic.version = 11 : i64} {
  func.func @_decoder_step_kernel(%arg0: i32, %arg1: memref<1x2x96xf32, #tpu.memory_space<vmem>>, %arg2: memref<2x32xf32, #tpu.memory_space<vmem>>, %arg3: memref<16x32xf32, #tpu.memory_space<vmem>>, %arg4: memref<2x16xf32, #tpu.memory_space<vmem>>, %arg5: memref<16x8xf32, #tpu.memory_space<vmem>>, %arg6: memref<32x96xf32, #tpu.memory_space<vmem>>, %arg7: memref<1x96xf32, #tpu.memory_space<vmem>>, %arg8: memref<64x32xf32, #tpu.memory_space<vmem>>, %arg9: memref<1x32xf32, #tpu.memory_space<vmem>>, %arg10: memref<32x48xf32, #tpu.memory_space<vmem>>, %arg11: memref<1x48xf32, #tpu.memory_space<vmem>>, %arg12: memref<1x2x128xf32, #tpu.memory_space<vmem>>, %arg13: memref<2x32xf32, #tpu.memory_space<vmem>>) attributes {dimension_semantics = [#tpu.dimension_semantics<arbitrary>], iteration_bounds = array<i64: 1>, scalar_prefetch = 0 : i64, scratch_operands = 0 : i64, tpu.core_type = #tpu.core_type<tc>, window_params = [{transform_indices = @transform_0, window_bounds = array<i64: 1, 2, 96>}, {pipeline_mode = #tpu.pipeline_mode<synchronous>, transform_indices = @transform_1, window_bounds = array<i64: 2, 32>}, {pipeline_mode = #tpu.pipeline_mode<synchronous>, transform_indices = @transform_2, window_bounds = array<i64: 16, 32>}, {pipeline_mode = #tpu.pipeline_mode<synchronous>, transform_indices = @transform_3, window_bounds = array<i64: 2, 16>}, {pipeline_mode = #tpu.pipeline_mode<synchronous>, transform_indices = @transform_4, window_bounds = array<i64: 16, 8>}, {pipeline_mode = #tpu.pipeline_mode<synchronous>, transform_indices = @transform_5, window_bounds = array<i64: 32, 96>}, {pipeline_mode = #tpu.pipeline_mode<synchronous>, transform_indices = @transform_6, window_bounds = array<i64: 1, 96>}, {pipeline_mode = #tpu.pipeline_mode<synchronous>, transform_indices = @transform_7, window_bounds = array<i64: 64, 32>}, {pipeline_mode = #tpu.pipeline_mode<synchronous>, transform_indices = @transform_8, window_bounds = array<i64: 1, 32>}, {pipeline_mode = #tpu.pipeline_mode<synchronous>, transform_indices = @transform_9, window_bounds = array<i64: 32, 48>}, {pipeline_mode = #tpu.pipeline_mode<synchronous>, transform_indices = @transform_10, window_bounds = array<i64: 1, 48>}, {transform_indices = @transform_11, window_bounds = array<i64: 1, 2, 128>}, {pipeline_mode = #tpu.pipeline_mode<synchronous>, transform_indices = @transform_12, window_bounds = array<i64: 2, 32>}]} {
    %c0_i32 = arith.constant 0 : i32
    %0 = arith.cmpi eq, %arg0, %c0_i32 : i32
    %1 = arith.extui %0 : i1 to i32
    %c0_i32_0 = arith.constant 0 : i32
    %2 = arith.cmpi ne, %1, %c0_i32_0 : i32
    scf.if %2 {
      %c0_40 = arith.constant 0 : index
      %c0_41 = arith.constant 0 : index
      %74 = vector.load %arg2[%c0_40, %c0_41] : memref<2x32xf32, #tpu.memory_space<vmem>>, vector<2x32xf32>
      %c0_42 = arith.constant 0 : index
      %c0_43 = arith.constant 0 : index
      %75 = vector.load %arg13[%c0_42, %c0_43] : memref<2x32xf32, #tpu.memory_space<vmem>>, vector<2x32xf32>
      tpu.vector_store %arg13[%c0_42, %c0_43], %74 {strides = array<i32>} : memref<2x32xf32, #tpu.memory_space<vmem>>, vector<2x32xf32>,
    } else {
    }
    %c0 = arith.constant 0 : index
    %c0_1 = arith.constant 0 : index
    %3 = vector.load %arg13[%c0, %c0_1] : memref<2x32xf32, #tpu.memory_space<vmem>>, vector<2x32xf32>
    %c0_2 = arith.constant 0 : index
    %c0_3 = arith.constant 0 : index
    %c0_4 = arith.constant 0 : index
    %4 = vector.load %arg1[%c0_2, %c0_3, %c0_4] : memref<1x2x96xf32, #tpu.memory_space<vmem>>, vector<1x2x96xf32>
    %5 = vector.shape_cast %4 : vector<1x2x96xf32> to vector<2x96xf32>
    %c0_5 = arith.constant 0 : index
    %c0_6 = arith.constant 0 : index
    %6 = vector.load %arg6[%c0_5, %c0_6] : memref<32x96xf32, #tpu.memory_space<vmem>>, vector<32x96xf32>
    %cst = arith.constant dense<0.000000e+00> : vector<2x96xf32>
    %7 = tpu.matmul %3, %6, %cst {dimension_numbers = #tpu.dot_dimension_numbers<[1], [0], [0], [1], [0, 0, 1, 1], [], []>} : vector<2x32xf32>, vector<32x96xf32>, vector<2x96xf32> -> vector<2x96xf32>
    %c0_7 = arith.constant 0 : index
    %c0_8 = arith.constant 0 : index
    %8 = vector.load %arg7[%c0_7, %c0_8] : memref<1x96xf32, #tpu.memory_space<vmem>>, vector<1x96xf32>
    %9 = vector.broadcast %8 : vector<1x96xf32> to vector<2x96xf32>
    %10 = arith.addf %7, %9 : vector<2x96xf32>
    %11 = vector.extract_strided_slice %5 {offsets = [0, 0], sizes = [2, 32], strides = [1, 1]} : vector<2x96xf32> to vector<2x32xf32>
    %12 = vector.extract_strided_slice %10 {offsets = [0, 0], sizes = [2, 32], strides = [1, 1]} : vector<2x96xf32> to vector<2x32xf32>
    %13 = arith.addf %11, %12 : vector<2x32xf32>
    %14 = arith.negf %13 : vector<2x32xf32>
    %15 = math.exp %14 : vector<2x32xf32>
    %cst_9 = arith.constant 1.000000e+00 : f32
    %16 = vector.broadcast %cst_9 : f32 to vector<2x32xf32>
    %17 = arith.addf %16, %15 : vector<2x32xf32>
    %18 = arith.divf %16, %17 : vector<2x32xf32>
    %19 = vector.extract_strided_slice %5 {offsets = [0, 32], sizes = [2, 32], strides = [1, 1]} : vector<2x96xf32> to vector<2x32xf32>
    %20 = vector.extract_strided_slice %10 {offsets = [0, 32], sizes = [2, 32], strides = [1, 1]} : vector<2x96xf32> to vector<2x32xf32>
    %21 = arith.addf %19, %20 : vector<2x32xf32>
    %22 = arith.negf %21 : vector<2x32xf32>
    %23 = math.exp %22 : vector<2x32xf32>
    %cst_10 = arith.constant 1.000000e+00 : f32
    %24 = vector.broadcast %cst_10 : f32 to vector<2x32xf32>
    %25 = arith.addf %24, %23 : vector<2x32xf32>
    %26 = arith.divf %24, %25 : vector<2x32xf32>
    %27 = vector.extract_strided_slice %5 {offsets = [0, 64], sizes = [2, 32], strides = [1, 1]} : vector<2x96xf32> to vector<2x32xf32>
    %28 = vector.extract_strided_slice %10 {offsets = [0, 64], sizes = [2, 32], strides = [1, 1]} : vector<2x96xf32> to vector<2x32xf32>
    %29 = arith.mulf %18, %28 : vector<2x32xf32>
    %30 = arith.addf %27, %29 : vector<2x32xf32>
    %31 = math.tanh %30 : vector<2x32xf32>
    %cst_11 = arith.constant 1.000000e+00 : f32
    %32 = vector.broadcast %cst_11 : f32 to vector<2x32xf32>
    %33 = arith.subf %32, %26 : vector<2x32xf32>
    %34 = arith.mulf %33, %31 : vector<2x32xf32>
    %35 = arith.mulf %26, %3 : vector<2x32xf32>
    %36 = arith.addf %34, %35 : vector<2x32xf32>
    %c0_12 = arith.constant 0 : index
    %c0_13 = arith.constant 0 : index
    %37 = vector.load %arg3[%c0_12, %c0_13] : memref<16x32xf32, #tpu.memory_space<vmem>>, vector<16x32xf32>
    %cst_14 = arith.constant dense<0.000000e+00> : vector<2x16xf32>
    %38 = tpu.matmul %36, %37, %cst_14 {dimension_numbers = #tpu.dot_dimension_numbers<[1], [1], [0], [0], [0, 0, 1, 0], [], []>} : vector<2x32xf32>, vector<16x32xf32>, vector<2x16xf32> -> vector<2x16xf32>
    %c0_15 = arith.constant 0 : index
    %c0_16 = arith.constant 0 : index
    %39 = vector.load %arg4[%c0_15, %c0_16] : memref<2x16xf32, #tpu.memory_space<vmem>>, vector<2x16xf32>
    %40 = arith.addf %38, %39 : vector<2x16xf32>
    %cst_17 = arith.constant dense<0xFF800000> : vector<2xf32>
    %41 = vector.multi_reduction <maximumf>, %40, %cst_17 [1] : vector<2x16xf32> to vector<2xf32>
    %42 = vector.shape_cast %41 : vector<2xf32> to vector<2x1xf32>
    %43 = vector.broadcast %42 : vector<2x1xf32> to vector<2x16xf32>
    %44 = arith.subf %40, %43 : vector<2x16xf32>
    %45 = math.exp %44 : vector<2x16xf32>
    %cst_18 = arith.constant dense<0.000000e+00> : vector<2xf32>
    %46 = vector.multi_reduction <add>, %45, %cst_18 [1] : vector<2x16xf32> to vector<2xf32>
    %47 = vector.shape_cast %46 : vector<2xf32> to vector<2x1xf32>
    %48 = vector.broadcast %47 : vector<2x1xf32> to vector<2x16xf32>
    %49 = arith.divf %45, %48 : vector<2x16xf32>
    %cst_19 = arith.constant dense<0.000000e+00> : vector<2x32xf32>
    %50 = tpu.matmul %49, %37, %cst_19 {dimension_numbers = #tpu.dot_dimension_numbers<[1], [0], [0], [1], [0, 0, 1, 1], [], []>} : vector<2x16xf32>, vector<16x32xf32>, vector<2x32xf32> -> vector<2x32xf32>
    %c0_20 = arith.constant 0 : index
    %c0_21 = arith.constant 0 : index
    %51 = vector.load %arg5[%c0_20, %c0_21] : memref<16x8xf32, #tpu.memory_space<vmem>>, vector<16x8xf32>
    %cst_22 = arith.constant dense<0.000000e+00> : vector<2x8xf32>
    %52 = tpu.matmul %49, %51, %cst_22 {dimension_numbers = #tpu.dot_dimension_numbers<[1], [0], [0], [1], [0, 0, 1, 1], [], []>} : vector<2x16xf32>, vector<16x8xf32>, vector<2x8xf32> -> vector<2x8xf32>
    %c0_23 = arith.constant 0 : index
    %c0_24 = arith.constant 0 : index
    %53 = vector.load %arg8[%c0_23, %c0_24] : memref<64x32xf32, #tpu.memory_space<vmem>>, vector<64x32xf32>
    %54 = vector.extract_strided_slice %53 {offsets = [0, 0], sizes = [32, 32], strides = [1, 1]} : vector<64x32xf32> to vector<32x32xf32>
    %cst_25 = arith.constant dense<0.000000e+00> : vector<2x32xf32>
    %55 = tpu.matmul %36, %54, %cst_25 {dimension_numbers = #tpu.dot_dimension_numbers<[1], [0], [0], [1], [0, 0, 1, 1], [], []>} : vector<2x32xf32>, vector<32x32xf32>, vector<2x32xf32> -> vector<2x32xf32>
    %56 = vector.extract_strided_slice %53 {offsets = [32, 0], sizes = [32, 32], strides = [1, 1]} : vector<64x32xf32> to vector<32x32xf32>
    %cst_26 = arith.constant dense<0.000000e+00> : vector<2x32xf32>
    %57 = tpu.matmul %50, %56, %cst_26 {dimension_numbers = #tpu.dot_dimension_numbers<[1], [0], [0], [1], [0, 0, 1, 1], [], []>} : vector<2x32xf32>, vector<32x32xf32>, vector<2x32xf32> -> vector<2x32xf32>
    %58 = arith.addf %55, %57 : vector<2x32xf32>
    %c0_27 = arith.constant 0 : index
    %c0_28 = arith.constant 0 : index
    %59 = vector.load %arg9[%c0_27, %c0_28] : memref<1x32xf32, #tpu.memory_space<vmem>>, vector<1x32xf32>
    %60 = vector.broadcast %59 : vector<1x32xf32> to vector<2x32xf32>
    %61 = arith.addf %58, %60 : vector<2x32xf32>
    %62 = math.tanh %61 : vector<2x32xf32>
    %c0_29 = arith.constant 0 : index
    %c0_30 = arith.constant 0 : index
    %63 = vector.load %arg10[%c0_29, %c0_30] : memref<32x48xf32, #tpu.memory_space<vmem>>, vector<32x48xf32>
    %cst_31 = arith.constant dense<0.000000e+00> : vector<2x48xf32>
    %64 = tpu.matmul %62, %63, %cst_31 {dimension_numbers = #tpu.dot_dimension_numbers<[1], [0], [0], [1], [0, 0, 1, 1], [], []>} : vector<2x32xf32>, vector<32x48xf32>, vector<2x48xf32> -> vector<2x48xf32>
    %c0_32 = arith.constant 0 : index
    %c0_33 = arith.constant 0 : index
    %65 = vector.load %arg11[%c0_32, %c0_33] : memref<1x48xf32, #tpu.memory_space<vmem>>, vector<1x48xf32>
    %66 = vector.broadcast %65 : vector<1x48xf32> to vector<2x48xf32>
    %67 = arith.addf %64, %66 : vector<2x48xf32>
    %cst_34 = arith.constant 0.000000e+00 : f32
    %68 = vector.broadcast %cst_34 : f32 to vector<2x72xf32>
    %69 = tpu.concatenate %52, %67, %68 in 1 : vector<2x8xf32>, vector<2x48xf32>, vector<2x72xf32> -> vector<2x128xf32>
    %c0_35 = arith.constant 0 : index
    %c0_36 = arith.constant 0 : index
    %c0_37 = arith.constant 0 : index
    %70 = vector.load %arg12[%c0_35, %c0_36, %c0_37] : memref<1x2x128xf32, #tpu.memory_space<vmem>>, vector<1x2x128xf32>
    %71 = vector.shape_cast %70 : vector<1x2x128xf32> to vector<2x128xf32>
    %72 = vector.shape_cast %69 : vector<2x128xf32> to vector<1x2x128xf32>
    tpu.vector_store %arg12[%c0_35, %c0_36, %c0_37], %72 {strides = array<i32>} : memref<1x2x128xf32, #tpu.memory_space<vmem>>, vector<1x2x128xf32>,
    %c0_38 = arith.constant 0 : index
    %c0_39 = arith.constant 0 : index
    %73 = vector.load %arg13[%c0_38, %c0_39] : memref<2x32xf32, #tpu.memory_space<vmem>>, vector<2x32xf32>
    tpu.vector_store %arg13[%c0_38, %c0_39], %36 {strides = array<i32>} : memref<2x32xf32, #tpu.memory_space<vmem>>, vector<2x32xf32>,
    return
  }
  func.func @transform_0(%arg0: i32) -> (i32, i32, i32) {
    %c0_i32 = arith.constant 0 : i32
    %c0_i32_0 = arith.constant 0 : i32
    %c0_i32_1 = arith.constant 0 : i32
    return %arg0, %c0_i32, %c0_i32_0 : i32, i32, i32
  }
  func.func @transform_1(%arg0: i32) -> (i32, i32) {
    %c0_i32 = arith.constant 0 : i32
    %c0_i32_0 = arith.constant 0 : i32
    %c0_i32_1 = arith.constant 0 : i32
    return %c0_i32, %c0_i32_0 : i32, i32
  }
  func.func @transform_2(%arg0: i32) -> (i32, i32) {
    %c0_i32 = arith.constant 0 : i32
    %c0_i32_0 = arith.constant 0 : i32
    %c0_i32_1 = arith.constant 0 : i32
    return %c0_i32, %c0_i32_0 : i32, i32
  }
  func.func @transform_3(%arg0: i32) -> (i32, i32) {
    %c0_i32 = arith.constant 0 : i32
    %c0_i32_0 = arith.constant 0 : i32
    %c0_i32_1 = arith.constant 0 : i32
    return %c0_i32, %c0_i32_0 : i32, i32
  }
  func.func @transform_4(%arg0: i32) -> (i32, i32) {
    %c0_i32 = arith.constant 0 : i32
    %c0_i32_0 = arith.constant 0 : i32
    %c0_i32_1 = arith.constant 0 : i32
    return %c0_i32, %c0_i32_0 : i32, i32
  }
  func.func @transform_5(%arg0: i32) -> (i32, i32) {
    %c0_i32 = arith.constant 0 : i32
    %c0_i32_0 = arith.constant 0 : i32
    %c0_i32_1 = arith.constant 0 : i32
    return %c0_i32, %c0_i32_0 : i32, i32
  }
  func.func @transform_6(%arg0: i32) -> (i32, i32) {
    %c0_i32 = arith.constant 0 : i32
    %c0_i32_0 = arith.constant 0 : i32
    %c0_i32_1 = arith.constant 0 : i32
    return %c0_i32, %c0_i32_0 : i32, i32
  }
  func.func @transform_7(%arg0: i32) -> (i32, i32) {
    %c0_i32 = arith.constant 0 : i32
    %c0_i32_0 = arith.constant 0 : i32
    %c0_i32_1 = arith.constant 0 : i32
    return %c0_i32, %c0_i32_0 : i32, i32
  }
  func.func @transform_8(%arg0: i32) -> (i32, i32) {
    %c0_i32 = arith.constant 0 : i32
    %c0_i32_0 = arith.constant 0 : i32
    %c0_i32_1 = arith.constant 0 : i32
    return %c0_i32, %c0_i32_0 : i32, i32
  }
  func.func @transform_9(%arg0: i32) -> (i32, i32) {
    %c0_i32 = arith.constant 0 : i32
    %c0_i32_0 = arith.constant 0 : i32
    %c0_i32_1 = arith.constant 0 : i32
    return %c0_i32, %c0_i32_0 : i32, i32
  }
  func.func @transform_10(%arg0: i32) -> (i32, i32) {
    %c0_i32 = arith.constant 0 : i32
    %c0_i32_0 = arith.constant 0 : i32
    %c0_i32_1 = arith.constant 0 : i32
    return %c0_i32, %c0_i32_0 : i32, i32
  }
  func.func @transform_11(%arg0: i32) -> (i32, i32, i32) {
    %c0_i32 = arith.constant 0 : i32
    %c0_i32_0 = arith.constant 0 : i32
    %c0_i32_1 = arith.constant 0 : i32
    return %arg0, %c0_i32, %c0_i32_0 : i32, i32, i32
  }
  func.func @transform_12(%arg0: i32) -> (i32, i32) {
    %c0_i32 = arith.constant 0 : i32
    %c0_i32_0 = arith.constant 0 : i32
    %c0_i32_1 = arith.constant 0 : i32
    return %c0_i32, %c0_i32_0 : i32, i32
  }
}

</mosaic_0001>

<llo_original>
// kernel: tpu_custom_call.1
$region0: #{tpu_custom_call.1}
  #allocation0 [shape = 'u32[]', space=smem, size = 0x4, offset = 0x4, fixed_abs, tag = 'smem constant byte address 0x4 - core index']
  #allocation1 [shape = 'u32[72,128]{1,0:T(1,128)}', space=vmem, size = 0x9000, scoped, tag = 'internal scratch']
  %s0 = inlined_call_operand.vmem [shape: f32[1,2,96], index: 0, kind: input, shape index: {}]
  %s1 = inlined_call_operand.vmem [shape: f32[2,32], index: 1, kind: input, shape index: {}]
  %s2 = inlined_call_operand.vmem [shape: f32[16,32], index: 2, kind: input, shape index: {}]
  %s3 = inlined_call_operand.vmem [shape: f32[2,16], index: 3, kind: input, shape index: {}]
  %s4 = inlined_call_operand.vmem [shape: f32[16,8], index: 4, kind: input, shape index: {}]
  %s5 = inlined_call_operand.vmem [shape: f32[32,96], index: 5, kind: input, shape index: {}]
  %s6 = inlined_call_operand.vmem [shape: f32[1,96], index: 6, kind: input, shape index: {}]
  %s7 = inlined_call_operand.vmem [shape: f32[64,32], index: 7, kind: input, shape index: {}]
  %s8 = inlined_call_operand.vmem [shape: f32[1,32], index: 8, kind: input, shape index: {}]
  %s9 = inlined_call_operand.vmem [shape: f32[32,48], index: 9, kind: input, shape index: {}]
  %s10 = inlined_call_operand.vmem [shape: f32[1,48], index: 10, kind: input, shape index: {}]
  %s11 = inlined_call_operand.hbm [shape: f32[1,2,128], index: 11, kind: output, shape index: {0}]
  %s12 = inlined_call_operand.hbm [shape: f32[2,32], index: 12, kind: output, shape index: {1}]
  %13 = xla_tuple %s11, %s12
  %s14 = sld [smem:[#allocation0]]
  $region66: #{tpu_custom_call.1} parent=0
    _
  %s16 = ssub.s32 1, %s14
  %s17 = scalar_select 0, %s16, %s14
  $region1: #{tpu_custom_call.1} parent=0
    #allocation2 [shape = 'u8[1024]{0}', space=vmem, size = 0x400, scoped, tag = 'output window, operand 0, single buffered']
    #allocation3 [shape = 's32[1]{0}', space=sflag, size = 0x4, scoped, tag = 'scoped memory for tpu_custom_call.1']
    #allocation4 [shape = 'u8[1024]{0}', space=vmem, size = 0x400, scoped, tag = 'output window, operand 1, single buffered']
    #allocation5 [shape = 's32[1]{0}', space=sflag, size = 0x4, scoped, tag = 'scoped memory for tpu_custom_call.1']
    %18 = vsyncpa [#allocation3], 0
    %19 = vsyncpa [#allocation5], 0
    // Predicated region
    $region2: #{tpu_custom_call.1} parent=1 // pred_check
      _
    $region3: #{tpu_custom_call.1} parent=1 // pred_check_branch
      %21 = sbr.rel (0) target = $region5
    $region4: #{tpu_custom_call.1} parent=1 // pred_region
      _
    $region5: #{tpu_custom_call.1} parent=1 // pred_fallthru
      _
    // Predicated region
    $region6: #{tpu_custom_call.1} parent=1 // pred_check
      _
    $region7: #{tpu_custom_call.1} parent=1 // pred_check_branch
      %23 = sbr.rel (0) target = $region9
    $region8: #{tpu_custom_call.1} parent=1 // pred_region
      _
    $region9: #{tpu_custom_call.1} parent=1 // pred_fallthru
      _
    // Predicated region
    $region10: #{tpu_custom_call.1} parent=1 // pred_check
      _
    $region11: #{tpu_custom_call.1} parent=1 // pred_check_branch
      %25 = sbr.rel (0) target = $region13
    $region12: #{tpu_custom_call.1} parent=1 // pred_region
      _
    $region13: #{tpu_custom_call.1} parent=1 // pred_fallthru
      _
    // Predicated region
    $region14: #{tpu_custom_call.1} parent=1 // pred_check
      _
    $region15: #{tpu_custom_call.1} parent=1 // pred_check_branch
      %27 = sbr.rel (0) target = $region17
    $region16: #{tpu_custom_call.1} parent=1 // pred_region
      _
    $region17: #{tpu_custom_call.1} parent=1 // pred_fallthru
      _
    // Predicated region
    $region18: #{tpu_custom_call.1} parent=1 // pred_check
      _
    $region19: #{tpu_custom_call.1} parent=1 // pred_check_branch
      %29 = sbr.rel (0) target = $region21
    $region20: #{tpu_custom_call.1} parent=1 // pred_region
      _
    $region21: #{tpu_custom_call.1} parent=1 // pred_fallthru
      _
    // Predicated region
    $region22: #{tpu_custom_call.1} parent=1 // pred_check
      _
    $region23: #{tpu_custom_call.1} parent=1 // pred_check_branch
      %31 = sbr.rel (0) target = $region25
    $region24: #{tpu_custom_call.1} parent=1 // pred_region
      _
    $region25: #{tpu_custom_call.1} parent=1 // pred_fallthru
      _
    // Predicated region
    $region26: #{tpu_custom_call.1} parent=1 // pred_check
      _
    $region27: #{tpu_custom_call.1} parent=1 // pred_check_branch
      %33 = sbr.rel (0) target = $region29
    $region28: #{tpu_custom_call.1} parent=1 // pred_region
      _
    $region29: #{tpu_custom_call.1} parent=1 // pred_fallthru
      _
    // Predicated region
    $region30: #{tpu_custom_call.1} parent=1 // pred_check
      _
    $region31: #{tpu_custom_call.1} parent=1 // pred_check_branch
      %35 = sbr.rel (0) target = $region33
    $region32: #{tpu_custom_call.1} parent=1 // pred_region
      _
    $region33: #{tpu_custom_call.1} parent=1 // pred_fallthru
      _
    // Predicated region
    $region34: #{tpu_custom_call.1} parent=1 // pred_check
      _
    $region35: #{tpu_custom_call.1} parent=1 // pred_check_branch
      %37 = sbr.rel (0) target = $region37
    $region36: #{tpu_custom_call.1} parent=1 // pred_region
      _
    $region37: #{tpu_custom_call.1} parent=1 // pred_fallthru
      _
    // Predicated region
    $region38: #{tpu_custom_call.1} parent=1 // pred_check
      _
    $region39: #{tpu_custom_call.1} parent=1 // pred_check_branch
      %39 = sbr.rel (0) target = $region41
    $region40: #{tpu_custom_call.1} parent=1 // pred_region
      _
    $region41: #{tpu_custom_call.1} parent=1 // pred_fallthru
      _
    // Predicated region
    $region42: #{tpu_custom_call.1} parent=1 // pred_check
      _
    $region43: #{tpu_custom_call.1} parent=1 // pred_check_branch
      %41 = sbr.rel (0) target = $region45
    $region44: #{tpu_custom_call.1} parent=1 // pred_region
      _
    $region45: #{tpu_custom_call.1} parent=1 // pred_fallthru
      _
    %p42 = scmp.eq.s32.totalorder 0, 0
    // Predicated region
    $region46: #{tpu_custom_call.1} parent=1 // pred_check
      %p43 = pneg %p42
    $region47: #{tpu_custom_call.1} parent=1 // pred_check_branch
      %45 = sbr.rel (%p43) target = $region49
    $region48: #{tpu_custom_call.1} parent=1 // pred_region
      %v46 = vld [vmem:[%s1] sm:$0x3]
      %vm47 = vcmask 254976
      %48 = vst.msk [vmem:[#allocation4] sm:$0x3] %vm47, %v46
    $region49: #{tpu_custom_call.1} parent=1 // pred_fallthru
      _
    %v49 = vld [vmem:[#allocation4] sm:$0x3]
    %v50 = vld [vmem:[%s0] sm:$0x3]
    %v51 = vld [vmem:[%s5] sm:$0xff]
    %v52 = vld [vmem:[%s5 + $0x8] sm:$0xff]
    %v53 = vld [vmem:[%s5 + $0x10] sm:$0xff]
    %v54 = vld [vmem:[%s5 + $0x18] sm:$0xff]
    %v55 = vld [vmem:[%s6] sm:$0x1]
    %v57 = vperm.slane %v55, 0
    %vm59 = vcmask 261120
    %v61 = vsel %vm59, %v49, 0
    %63 = vmatpush.msra.mxu0 0.0
    %64 = vmatpush.msra.mxu0 0.0
    %65 = vmatpush.msra.mxu0 0.0
    %66 = vmatpush.msra.mxu0 0.0
    %67 = vmatpush.msra.mxu0 0.0
    %68 = vmatpush.msra.mxu0 0.0
    %69 = vmatpush.msra.mxu0 0.0
    %70 = vmatpush.msra.mxu0 0.0
    %71 = vmatpush.msra.mxu0 0.0
    %72 = vmatpush.msra.mxu0 0.0
    %73 = vmatpush.msra.mxu0 0.0
    %74 = vmatpush.msra.mxu0 0.0
    %75 = vmatpush.msra.mxu0 %v54
    %76 = vmatpush.msra.mxu0 %v53
    %77 = vmatpush.msra.mxu0 %v52
    %78 = vmatpush.msra.mxu0 %v51
    %79 = vmatmul.f32.gmra.mxu0 %v61
    %v80 = vpop.f32.mrf.mxu0
    %v81 = vadd.f32 %v57, %v80
    %82 = vdwg.mxu0
    %v83 = vadd.f32 %v50, %v81
    %v84 = vxor.u32 %v83, 2147483648
    %v85 = vmul.f32 %v84, 1.442695
    %v86 = vpow.pop %v85
    %v87 = vadd.f32 %v86, 1.0
    %v88 = vrcp.pop %v87
    %v89 = vmul.f32 %v87, %v88
    %v90 = vsub.f32 1.0, %v89
    %v91 = vmul.f32 %v88, %v90
    %v92 = vadd.f32 %v88, %v91
    %vm93 = vweird.f32 %v87
    %vm94 = vweird.f32 %v88
    %vm95 = vmor %vm93, %vm94
    %v96 = vsel %vm95, %v88, %v92
    %v97 = vand.u32 2147483647, %v87
    %vm98 = vcmp.eq.f32.partialorder %v97, 8.507059e+37
    %v99 = vand.u32 %v87, 2147483648
    %v100 = vor.u32 1.1754944e-38, %v99
    %v101 = vsel %vm98, %v100, %v96
    %v102 = vmul.f32 1.0, %v101
    %104 = vrot.lane.b32.xlu0 %v81, 64
    %v105 = vpop.permute.xlu0 %104
    %v107 = vmul.f32 %v102, %v105
    %109 = vrot.lane.b32.xlu0 %v107, 64
    %v110 = vpop.permute.xlu0 %109
    %v112 = vadd.f32 %v50, %v110
    %v113 = vtanh.pop %v112
    %v114 = vsub.f32 1.0, %v102
    %116 = vrot.lane.b32.xlu0 %v113, 96
    %v117 = vpop.permute.xlu0 %116
    %v119 = vmul.f32 %v114, %v117
    %120 = vrot.lane.b32.xlu0 %v49, 32
    %v121 = vpop.permute.xlu0 %120
    %v123 = vmul.f32 %v102, %v121
    %v124 = vadd.f32 %v119, %v123
    %v125 = vld [vmem:[%s2] sm:$0xff]
    %v126 = vld [vmem:[%s2 + $0x8] sm:$0xff]
    %v127 = vld [vmem:[%s3] sm:$0x3]
    %129 = vrot.lane.b32.xlu0 %v124, 96
    %v130 = vpop.permute.xlu0 %129
    %v131 = vsel %vm59, %v130, 0
    %v134 = vsel %vm59, %v125, 0
    %v137 = vsel %vm59, %v126, 0
    %139 = vmatpush.xpose.msra.mxu0 0.0
    %140 = vmatpush.xpose.msra.mxu0 0.0
    %141 = vmatpush.xpose.msra.mxu0 0.0
    %142 = vmatpush.xpose.msra.mxu0 0.0
    %143 = vmatpush.xpose.msra.mxu0 0.0
    %144 = vmatpush.xpose.msra.mxu0 0.0
    %145 = vmatpush.xpose.msra.mxu0 0.0
    %146 = vmatpush.xpose.msra.mxu0 0.0
    %147 = vmatpush.xpose.msra.mxu0 0.0
    %148 = vmatpush.xpose.msra.mxu0 0.0
    %149 = vmatpush.xpose.msra.mxu0 0.0
    %150 = vmatpush.xpose.msra.mxu0 0.0
    %151 = vmatpush.xpose.msra.mxu0 0.0
    %152 = vmatpush.xpose.msra.mxu0 0.0
    %153 = vmatpush.xpose.msra.mxu0 %v137
    %154 = vmatpush.xpose.msra.mxu0 %v134
    %155 = vmatmul.f32.gmra.mxu0 %v131
    %v156 = vpop.f32.mrf.mxu0
    %v157 = vadd.f32 %v127, %v156
    %158 = vdwg.mxu0
    %vm159 = vcmask 123904
    %v160 = vsel %vm159, %v157, -inf
    %161 = vmax.xlane.f32.xlu0 %v160
    %v162 = vpop.xlane.xlu0 %161
    %v163 = vsub.f32 %v157, %v162
    %v164 = vmul.f32 %v163, 1.442695
    %v165 = vpow.pop %v164
    %v166 = vsel %vm159, %v165, 0.0
    %167 = vadd.xlane.f32.xlu0 %v166
    %v168 = vpop.xlane.xlu0 %167
    %v169 = vrcp.pop %v168
    %v170 = vmul.f32 %v168, %v169
    %v171 = vsub.f32 1.0, %v170
    %v172 = vmul.f32 %v169, %v171
    %v173 = vadd.f32 %v169, %v172
    %vm174 = vweird.f32 %v168
    %vm175 = vweird.f32 %v169
    %vm176 = vmor %vm174, %vm175
    %v177 = vsel %vm176, %v169, %v173
    %v178 = vand.u32 2147483647, %v168
    %vm179 = vcmp.eq.f32.partialorder %v178, 8.507059e+37
    %v180 = vand.u32 %v168, 2147483648
    %v181 = vor.u32 1.1754944e-38, %v180
    %v182 = vsel %vm179, %v181, %v177
    %v183 = vmul.f32 %v165, %v182
    %vm184 = vcmask 130048
    %v186 = vsel %vm184, %v183, 0
    %188 = vmatpush.msra.mxu0 0.0
    %189 = vmatpush.msra.mxu0 0.0
    %190 = vmatpush.msra.mxu0 0.0
    %191 = vmatpush.msra.mxu0 0.0
    %192 = vmatpush.msra.mxu0 0.0
    %193 = vmatpush.msra.mxu0 0.0
    %194 = vmatpush.msra.mxu0 0.0
    %195 = vmatpush.msra.mxu0 0.0
    %196 = vmatpush.msra.mxu0 0.0
    %197 = vmatpush.msra.mxu0 0.0
    %198 = vmatpush.msra.mxu0 0.0
    %199 = vmatpush.msra.mxu0 0.0
    %200 = vmatpush.msra.mxu0 0.0
    %201 = vmatpush.msra.mxu0 0.0
    %202 = vmatpush.msra.mxu0 %v126
    %203 = vmatpush.msra.mxu0 %v125
    %204 = vmatmul.f32.gmra.mxu0 %v186
    %v205 = vpop.f32.mrf.mxu0
    %v206 = vadd.f32 0.0, %v205
    %207 = vdwg.mxu0
    %v208 = vld [vmem:[%s4] sm:$0xff]
    %v209 = vld [vmem:[%s4 + $0x8] sm:$0xff]
    %210 = vmatpush.msra.mxu0 0.0
    %211 = vmatpush.msra.mxu0 0.0
    %212 = vmatpush.msra.mxu0 0.0
    %213 = vmatpush.msra.mxu0 0.0
    %214 = vmatpush.msra.mxu0 0.0
    %215 = vmatpush.msra.mxu0 0.0
    %216 = vmatpush.msra.mxu0 0.0
    %217 = vmatpush.msra.mxu0 0.0
    %218 = vmatpush.msra.mxu0 0.0
    %219 = vmatpush.msra.mxu0 0.0
    %220 = vmatpush.msra.mxu0 0.0
    %221 = vmatpush.msra.mxu0 0.0
    %222 = vmatpush.msra.mxu0 0.0
    %223 = vmatpush.msra.mxu0 0.0
    %224 = vmatpush.msra.mxu0 %v209
    %225 = vmatpush.msra.mxu0 %v208
    %226 = vmatmul.f32.gmra.mxu0 %v186
    %v227 = vpop.f32.mrf.mxu0
    %v228 = vadd.f32 0.0, %v227
    %229 = vdwg.mxu0
    %v230 = vld [vmem:[%s7] sm:$0xff]
    %v231 = vld [vmem:[%s7 + $0x8] sm:$0xff]
    %v232 = vld [vmem:[%s7 + $0x10] sm:$0xff]
    %v233 = vld [vmem:[%s7 + $0x18] sm:$0xff]
    %v234 = vld [vmem:[%s7 + $0x20] sm:$0xff]
    %v235 = vld [vmem:[%s7 + $0x28] sm:$0xff]
    %v236 = vld [vmem:[%s7 + $0x30] sm:$0xff]
    %v237 = vld [vmem:[%s7 + $0x38] sm:$0xff]
    %v239 = vsel %vm59, %v206, 0
    %241 = vmatpush.msra.mxu0 0.0
    %242 = vmatpush.msra.mxu0 0.0
    %243 = vmatpush.msra.mxu0 0.0
    %244 = vmatpush.msra.mxu0 0.0
    %245 = vmatpush.msra.mxu0 0.0
    %246 = vmatpush.msra.mxu0 0.0
    %247 = vmatpush.msra.mxu0 0.0
    %248 = vmatpush.msra.mxu0 0.0
    %249 = vmatpush.msra.mxu0 0.0
    %250 = vmatpush.msra.mxu0 0.0
    %251 = vmatpush.msra.mxu0 0.0
    %252 = vmatpush.msra.mxu0 0.0
    %253 = vmatpush.msra.mxu0 %v237
    %254 = vmatpush.msra.mxu0 %v236
    %255 = vmatpush.msra.mxu0 %v235
    %256 = vmatpush.msra.mxu0 %v234
    %257 = vmatmul.f32.gmra.mxu0 %v239
    %v258 = vpop.f32.mrf.mxu0
    %v259 = vadd.f32 0.0, %v258
    %260 = vdwg.mxu0
    %261 = vmatpush.msra.mxu0 0.0
    %262 = vmatpush.msra.mxu0 0.0
    %263 = vmatpush.msra.mxu0 0.0
    %264 = vmatpush.msra.mxu0 0.0
    %265 = vmatpush.msra.mxu0 0.0
    %266 = vmatpush.msra.mxu0 0.0
    %267 = vmatpush.msra.mxu0 0.0
    %268 = vmatpush.msra.mxu0 0.0
    %269 = vmatpush.msra.mxu0 0.0
    %270 = vmatpush.msra.mxu0 0.0
    %271 = vmatpush.msra.mxu0 0.0
    %272 = vmatpush.msra.mxu0 0.0
    %273 = vmatpush.msra.mxu0 %v233
    %274 = vmatpush.msra.mxu0 %v232
    %275 = vmatpush.msra.mxu0 %v231
    %276 = vmatpush.msra.mxu0 %v230
    %277 = vmatmul.f32.gmra.mxu0 %v131
    %v278 = vpop.f32.mrf.mxu0
    %v279 = vadd.f32 %v259, %v278
    %280 = vdwg.mxu0
    %v281 = vld [vmem:[%s8] sm:$0x1]
    %v283 = vperm.slane %v281, 0
    %v285 = vadd.f32 %v279, %v283
    %v286 = vtanh.pop %v285
    %v287 = vld [vmem:[%s9] sm:$0xff]
    %v288 = vld [vmem:[%s9 + $0x8] sm:$0xff]
    %v289 = vld [vmem:[%s9 + $0x10] sm:$0xff]
    %v290 = vld [vmem:[%s9 + $0x18] sm:$0xff]
    %v291 = vld [vmem:[%s10] sm:$0x1]
    %v293 = vperm.slane %v291, 0
    %v296 = vsel %vm59, %v286, 0
    %298 = vmatpush.msra.mxu0 0.0
    %299 = vmatpush.msra.mxu0 0.0
    %300 = vmatpush.msra.mxu0 0.0
    %301 = vmatpush.msra.mxu0 0.0
    %302 = vmatpush.msra.mxu0 0.0
    %303 = vmatpush.msra.mxu0 0.0
    %304 = vmatpush.msra.mxu0 0.0
    %305 = vmatpush.msra.mxu0 0.0
    %306 = vmatpush.msra.mxu0 0.0
    %307 = vmatpush.msra.mxu0 0.0
    %308 = vmatpush.msra.mxu0 0.0
    %309 = vmatpush.msra.mxu0 0.0
    %310 = vmatpush.msra.mxu0 %v290
    %311 = vmatpush.msra.mxu0 %v289
    %312 = vmatpush.msra.mxu0 %v288
    %313 = vmatpush.msra.mxu0 %v287
    %314 = vmatmul.f32.gmra.mxu0 %v296
    %v315 = vpop.f32.mrf.mxu0
    %v316 = vadd.f32 %v293, %v315
    %317 = vdwg.mxu0
    %319 = vrot.lane.b32.xlu0 %v316, 8
    %v320 = vpop.permute.xlu0 %319
    %vm322 = vcmask 64512
    %v323 = vsel %vm322, %v228, %v320
    %vm324 = vcmask 457728
    %v325 = vsel %vm324, %v323, 0.0
    %326 = vst [vmem:[#allocation2] sm:$0x3] %v325
    %vm328 = vcmask 254976
    %329 = vst.msk [vmem:[#allocation4] sm:$0x3] %vm328, %v130
    // Predicated region
    $region50: #{tpu_custom_call.1} parent=1 // pred_check
      _
    $region51: #{tpu_custom_call.1} parent=1 // pred_check_branch
      %331 = sbr.rel (0) target = $region53
    $region52: #{tpu_custom_call.1} parent=1 // pred_region
      %333 = vsyncadd [#allocation3], 0
      %s335 = sshll.u32 [#allocation2], 4
      %s336 = int_to_ptr.vmem [resolvable:$true] %s335
      %s337 = sshll.u32 %s11, 4
      %s338 = int_to_ptr.hbm [resolvable:$true] %s337
      %340 = dma.vmem_to_hbm [thread:$0]  %s336, 32, %s338, [#allocation3]
    $region53: #{tpu_custom_call.1} parent=1 // pred_fallthru
      _
    // Predicated region
    $region54: #{tpu_custom_call.1} parent=1 // pred_check
      _
    $region55: #{tpu_custom_call.1} parent=1 // pred_check_branch
      %342 = sbr.rel (0) target = $region57
    $region56: #{tpu_custom_call.1} parent=1 // pred_region
      %344 = vsyncadd [#allocation5], 0
      %s346 = sshll.u32 [#allocation4], 4
      %s347 = int_to_ptr.vmem [resolvable:$true] %s346
      %s348 = sshll.u32 %s12, 4
      %s349 = int_to_ptr.hbm [resolvable:$true] %s348
      %351 = dma.vmem_to_hbm [thread:$0]  %s347, 32, %s349, [#allocation5]
    $region57: #{tpu_custom_call.1} parent=1 // pred_fallthru
      _
    // Predicated region
    $region58: #{tpu_custom_call.1} parent=1 // pred_check
      _
    $region59: #{tpu_custom_call.1} parent=1 // pred_check_branch
      %353 = sbr.rel (0) target = $region61
    $region60: #{tpu_custom_call.1} parent=1 // pred_region
      %355 = dma.done [#allocation3], 32
    $region61: #{tpu_custom_call.1} parent=1 // pred_fallthru
      _
    // Predicated region
    $region62: #{tpu_custom_call.1} parent=1 // pred_check
      _
    $region63: #{tpu_custom_call.1} parent=1 // pred_check_branch
      %357 = sbr.rel (0) target = $region65
    $region64: #{tpu_custom_call.1} parent=1 // pred_region
      %359 = dma.done [#allocation5], 32
    $region65: #{tpu_custom_call.1} parent=1 // pred_fallthru
      _
    %360 = vsyncpa [#allocation3], 1
    %361 = vsyncpa [#allocation5], 1

</llo_original>
